<compile_context>
chip_gen: v7x
topology: tpu7x:2x2x1
jax: 0.10.0
libtpu: 0.0.40
codegen_flags: <defaults>
</compile_context>

<pallas_src>
import jax
import jax.numpy as jnp
from jax.experimental import pallas as pl
from jax.experimental.pallas import tpu as pltpu

NEG_SLOPE = 0.2
LANE = 128
DEFAULT_TILE_B = 2048  # lane-axis batch tile; VMEM use is tiny (F*tb*2B double-buffered)


def _leaky_relu(x, slope):
    return jnp.where(x > 0, x, slope * x)


def _round_up(n, m):
    return ((n + m - 1) // m) * m


def n20_kernel(x_ref, w1_ref, b1_ref, w2_ref, b2_ref, w3_ref, b3_ref, o_ref):
    # Transposed layout: batch on lanes.
    #   x_ref : (F, TB) bf16    w_k : (out_k, in_k) bf16    b_k : (out_k, 1) f32
    x = x_ref[...]

    # Linear(F, 27) + LeakyReLU(0.2).  (27, F) @ (F, TB) -> (27, TB), f32 acc.
    h1 = jnp.dot(w1_ref[...], x, preferred_element_type=jnp.float32) + b1_ref[...]
    h1 = _leaky_relu(h1, NEG_SLOPE)

    # Linear(27, 16) + Dropout(p=0.2, eval -> identity) + LeakyReLU(0.2).
    # TODO(synk): train-mode dropout (mask + 1/(1-p) scale via
    #             pltpu.prng_random_bits) intentionally not implemented.
    h2 = jnp.dot(w2_ref[...], h1.astype(jnp.bfloat16),
                 preferred_element_type=jnp.float32) + b2_ref[...]
    h2 = _leaky_relu(h2, NEG_SLOPE)

    # Linear(16, 1).  In this layout it is (1, 16) @ (16, TB) -> (1, TB):
    # full-width N on the MXU and a lane-dense output store.
    out = jnp.dot(w3_ref[...], h2.astype(jnp.bfloat16),
                  preferred_element_type=jnp.float32) + b3_ref[...]
    o_ref[...] = out.astype(o_ref.dtype)


def n20_net_forward(x, params, *, tile_b=DEFAULT_TILE_B):
    """Eval-mode forward.  x: (B, input_size) f32.  params: PyTorch-style
    weights w_k (out, in) and biases b_k (out,).  Returns (B, 1) f32."""
    B, F = x.shape
    w1, b1 = params["w1"], params["b1"]
    w2, b2 = params["w2"], params["b2"]
    w3, b3 = params["w3"], params["b3"]

    # Stage: batch onto lanes, bf16 for the matmul operands (f32 accumulation
    # inside the kernel), biases stay f32 as (out, 1) for lane broadcast.
    xt = x.T.astype(jnp.bfloat16)                 # (F, B)
    w1b = w1.astype(jnp.bfloat16)                 # (27, F)
    w2b = w2.astype(jnp.bfloat16)                 # (16, 27)
    w3b = w3.astype(jnp.bfloat16)                 # (1, 16)
    b1c = b1.reshape(-1, 1).astype(jnp.float32)   # (27, 1)
    b2c = b2.reshape(-1, 1).astype(jnp.float32)   # (16, 1)
    b3c = b3.reshape(-1, 1).astype(jnp.float32)   # (1, 1)

    # Batch tiling along the lane axis: tiles are 128-aligned and as large as
    # useful; pad B up to a whole number of tiles (zero columns, sliced off).
    tb = min(tile_b, _round_up(B, LANE))
    Bp = _round_up(B, tb)
    if Bp != B:
        xt = jnp.pad(xt, ((0, 0), (0, Bp - B)))
    grid = (Bp // tb,)

    const = lambda shape: pl.BlockSpec(shape, lambda i: (0, 0))  # resident weights
    out_t = pl.pallas_call(
        n20_kernel,
        out_shape=jax.ShapeDtypeStruct((1, Bp), jnp.float32),
        grid=grid,
        in_specs=[
            pl.BlockSpec((F, tb), lambda i: (0, i)),   # stream x batch tiles
            const(w1b.shape), const(b1c.shape),
            const(w2b.shape), const(b2c.shape),
            const(w3b.shape), const(b3c.shape),
        ],
        out_specs=pl.BlockSpec((1, tb), lambda i: (0, i)),
        compiler_params=pltpu.CompilerParams(
            dimension_semantics=("parallel",)),        # megacore / 2-TC sharding
    )(xt, w1b, b1c, w2b, b2c, w3b, b3c)

    return out_t[:, :B].T                              # (B, 1)


def init_params(key, input_size):
    """Deterministic init mimicking nn.Linear's U(-1/sqrt(fan_in), 1/sqrt(fan_in)).
    PyTorch layout: weights (out_features, in_features), biases (out_features,)."""
    dims = [(input_size, 27), (27, 16), (16, 1)]
    params = {}
    for i, (fan_in, fan_out) in enumerate(dims, start=1):
        key, kw, kb = jax.random.split(key, 3)
        bound = 1.0 / jnp.sqrt(jnp.float32(fan_in))
        params[f"w{i}"] = jax.random.uniform(
            kw, (fan_out, fan_in), jnp.float32, -bound, bound)
        params[f"b{i}"] = jax.random.uniform(
            kb, (fan_out,), jnp.float32, -bound, bound)
    return params


if __name__ == "__main__":
    input_size = 32
    batch = 8

    key = jax.random.PRNGKey(0)
    key, kx = jax.random.split(key)
    x = jax.random.normal(kx, (batch, input_size), jnp.float32)
    params = init_params(key, input_size)

    out = jax.block_until_ready(n20_net_forward(x, params))
    assert out.shape == (batch, 1)

    # Reference in plain JAX with identical bf16 operand staging (eval dropout).
    bf = lambda a: a.astype(jnp.bfloat16).astype(jnp.float32)
    h = _leaky_relu(bf(x) @ bf(params["w1"]).T + params["b1"][None, :], NEG_SLOPE)
    h = _leaky_relu(bf(h) @ bf(params["w2"]).T + params["b2"][None, :], NEG_SLOPE)
    ref = bf(h) @ bf(params["w3"]).T + params["b3"][None, :]
    assert jnp.allclose(out, ref, atol=1e-3, rtol=1e-3), float(
        jnp.max(jnp.abs(out - ref)))

    print("KERNEL_OK")
</pallas_src>

<mosaic_0001>
module attributes {stable_mosaic.version = 11 : i64} {
  func.func @n20_kernel(%arg0: i32, %arg1: memref<32x128xbf16, #tpu.memory_space<vmem>>, %arg2: memref<27x32xbf16, #tpu.memory_space<vmem>>, %arg3: memref<27x1xf32, #tpu.memory_space<vmem>>, %arg4: memref<16x27xbf16, #tpu.memory_space<vmem>>, %arg5: memref<16x1xf32, #tpu.memory_space<vmem>>, %arg6: memref<1x16xbf16, #tpu.memory_space<vmem>>, %arg7: memref<1x1xf32, #tpu.memory_space<vmem>>, %arg8: memref<1x128xf32, #tpu.memory_space<vmem>>) attributes {dimension_semantics = [#tpu.dimension_semantics<parallel>], iteration_bounds = array<i64: 1>, scalar_prefetch = 0 : i64, scratch_operands = 0 : i64, tpu.core_type = #tpu.core_type<tc>, window_params = [{transform_indices = @transform_0, window_bounds = array<i64: 32, 128>}, {pipeline_mode = #tpu.pipeline_mode<synchronous>, transform_indices = @transform_1, window_bounds = array<i64: 27, 32>}, {pipeline_mode = #tpu.pipeline_mode<synchronous>, transform_indices = @transform_2, window_bounds = array<i64: 27, 1>}, {pipeline_mode = #tpu.pipeline_mode<synchronous>, transform_indices = @transform_3, window_bounds = array<i64: 16, 27>}, {pipeline_mode = #tpu.pipeline_mode<synchronous>, transform_indices = @transform_4, window_bounds = array<i64: 16, 1>}, {pipeline_mode = #tpu.pipeline_mode<synchronous>, transform_indices = @transform_5, window_bounds = array<i64: 1, 16>}, {pipeline_mode = #tpu.pipeline_mode<synchronous>, transform_indices = @transform_6, window_bounds = array<i64: 1, 1>}, {transform_indices = @transform_7, window_bounds = array<i64: 1, 128>}]} {
    %c0 = arith.constant 0 : index
    %c0_0 = arith.constant 0 : index
    %0 = vector.load %arg1[%c0, %c0_0] : memref<32x128xbf16, #tpu.memory_space<vmem>>, vector<32x128xbf16>
    %c0_1 = arith.constant 0 : index
    %c0_2 = arith.constant 0 : index
    %1 = vector.load %arg2[%c0_1, %c0_2] : memref<27x32xbf16, #tpu.memory_space<vmem>>, vector<27x32xbf16>
    %cst = arith.constant dense<0.000000e+00> : vector<27x128xf32>
    %2 = tpu.matmul %1, %0, %cst {dimension_numbers = #tpu.dot_dimension_numbers<[1], [0], [0], [1], [0, 0, 1, 1], [], []>} : vector<27x32xbf16>, vector<32x128xbf16>, vector<27x128xf32> -> vector<27x128xf32>
    %c0_3 = arith.constant 0 : index
    %c0_4 = arith.constant 0 : index
    %3 = vector.load %arg3[%c0_3, %c0_4] : memref<27x1xf32, #tpu.memory_space<vmem>>, vector<27x1xf32>
    %4 = vector.broadcast %3 : vector<27x1xf32> to vector<27x128xf32>
    %5 = arith.addf %2, %4 : vector<27x128xf32>
    %cst_5 = arith.constant 0.000000e+00 : f32
    %6 = vector.broadcast %cst_5 : f32 to vector<27x128xf32>
    %7 = arith.cmpf ogt, %5, %6 : vector<27x128xf32>
    %cst_6 = arith.constant 2.000000e-01 : f32
    %8 = vector.broadcast %cst_6 : f32 to vector<27x128xf32>
    %9 = arith.mulf %8, %5 : vector<27x128xf32>
    %10 = arith.select %7, %5, %9 : vector<27x128xi1>, vector<27x128xf32>
    %c0_7 = arith.constant 0 : index
    %c0_8 = arith.constant 0 : index
    %11 = vector.load %arg4[%c0_7, %c0_8] : memref<16x27xbf16, #tpu.memory_space<vmem>>, vector<16x27xbf16>
    %12 = arith.truncf %10 : vector<27x128xf32> to vector<27x128xbf16>
    %cst_9 = arith.constant dense<0.000000e+00> : vector<16x128xf32>
    %13 = tpu.matmul %11, %12, %cst_9 {dimension_numbers = #tpu.dot_dimension_numbers<[1], [0], [0], [1], [0, 0, 1, 1], [], []>} : vector<16x27xbf16>, vector<27x128xbf16>, vector<16x128xf32> -> vector<16x128xf32>
    %c0_10 = arith.constant 0 : index
    %c0_11 = arith.constant 0 : index
    %14 = vector.load %arg5[%c0_10, %c0_11] : memref<16x1xf32, #tpu.memory_space<vmem>>, vector<16x1xf32>
    %15 = vector.broadcast %14 : vector<16x1xf32> to vector<16x128xf32>
    %16 = arith.addf %13, %15 : vector<16x128xf32>
    %cst_12 = arith.constant 0.000000e+00 : f32
    %17 = vector.broadcast %cst_12 : f32 to vector<16x128xf32>
    %18 = arith.cmpf ogt, %16, %17 : vector<16x128xf32>
    %cst_13 = arith.constant 2.000000e-01 : f32
    %19 = vector.broadcast %cst_13 : f32 to vector<16x128xf32>
    %20 = arith.mulf %19, %16 : vector<16x128xf32>
    %21 = arith.select %18, %16, %20 : vector<16x128xi1>, vector<16x128xf32>
    %c0_14 = arith.constant 0 : index
    %c0_15 = arith.constant 0 : index
    %22 = vector.load %arg6[%c0_14, %c0_15] : memref<1x16xbf16, #tpu.memory_space<vmem>>, vector<1x16xbf16>
    %23 = arith.truncf %21 : vector<16x128xf32> to vector<16x128xbf16>
    %cst_16 = arith.constant dense<0.000000e+00> : vector<1x128xf32>
    %24 = tpu.matmul %22, %23, %cst_16 {dimension_numbers = #tpu.dot_dimension_numbers<[1], [0], [0], [1], [0, 0, 1, 1], [], []>} : vector<1x16xbf16>, vector<16x128xbf16>, vector<1x128xf32> -> vector<1x128xf32>
    %c0_17 = arith.constant 0 : index
    %c0_18 = arith.constant 0 : index
    %25 = vector.load %arg7[%c0_17, %c0_18] : memref<1x1xf32, #tpu.memory_space<vmem>>, vector<1x1xf32>
    %26 = vector.broadcast %25 : vector<1x1xf32> to vector<1x128xf32>
    %27 = arith.addf %24, %26 : vector<1x128xf32>
    %c0_19 = arith.constant 0 : index
    %c0_20 = arith.constant 0 : index
    %28 = vector.load %arg8[%c0_19, %c0_20] : memref<1x128xf32, #tpu.memory_space<vmem>>, vector<1x128xf32>
    tpu.vector_store %arg8[%c0_19, %c0_20], %27 {strides = array<i32>} : memref<1x128xf32, #tpu.memory_space<vmem>>, vector<1x128xf32>,
    return
  }
  func.func @transform_0(%arg0: i32) -> (i32, i32) {
    %c0_i32 = arith.constant 0 : i32
    %c0_i32_0 = arith.constant 0 : i32
    return %c0_i32, %arg0 : i32, i32
  }
  func.func @transform_1(%arg0: i32) -> (i32, i32) {
    %c0_i32 = arith.constant 0 : i32
    %c0_i32_0 = arith.constant 0 : i32
    %c0_i32_1 = arith.constant 0 : i32
    return %c0_i32, %c0_i32_0 : i32, i32
  }
  func.func @transform_2(%arg0: i32) -> (i32, i32) {
    %c0_i32 = arith.constant 0 : i32
    %c0_i32_0 = arith.constant 0 : i32
    %c0_i32_1 = arith.constant 0 : i32
    return %c0_i32, %c0_i32_0 : i32, i32
  }
  func.func @transform_3(%arg0: i32) -> (i32, i32) {
    %c0_i32 = arith.constant 0 : i32
    %c0_i32_0 = arith.constant 0 : i32
    %c0_i32_1 = arith.constant 0 : i32
    return %c0_i32, %c0_i32_0 : i32, i32
  }
  func.func @transform_4(%arg0: i32) -> (i32, i32) {
    %c0_i32 = arith.constant 0 : i32
    %c0_i32_0 = arith.constant 0 : i32
    %c0_i32_1 = arith.constant 0 : i32
    return %c0_i32, %c0_i32_0 : i32, i32
  }
  func.func @transform_5(%arg0: i32) -> (i32, i32) {
    %c0_i32 = arith.constant 0 : i32
    %c0_i32_0 = arith.constant 0 : i32
    %c0_i32_1 = arith.constant 0 : i32
    return %c0_i32, %c0_i32_0 : i32, i32
  }
  func.func @transform_6(%arg0: i32) -> (i32, i32) {
    %c0_i32 = arith.constant 0 : i32
    %c0_i32_0 = arith.constant 0 : i32
    %c0_i32_1 = arith.constant 0 : i32
    return %c0_i32, %c0_i32_0 : i32, i32
  }
  func.func @transform_7(%arg0: i32) -> (i32, i32) {
    %c0_i32 = arith.constant 0 : i32
    %c0_i32_0 = arith.constant 0 : i32
    return %c0_i32, %arg0 : i32, i32
  }
}

</mosaic_0001>

<llo_original>
// kernel: tpu_custom_call.1
$region0: #{tpu_custom_call.1}
  #allocation0 [shape = 'u32[]', space=smem, size = 0x4, offset = 0x4, fixed_abs, tag = 'smem constant byte address 0x4 - core index']
  #allocation1 [shape = 'u32[144,128]{1,0:T(1,128)}', space=vmem, size = 0x12000, scoped, tag = 'internal scratch']
  #allocation2 [shape = 'f32[1,1]{1,0:T(1,128)S(1)}', space=vmem, size = 0x200, scoped, tag = 'scoped memory for tpu_custom_call.1']
  %s0 = inlined_call_operand.vmem [shape: bf16[32,128], index: 0, kind: input, shape index: {}]
  %s1 = inlined_call_operand.vmem [shape: bf16[27,32], index: 1, kind: input, shape index: {}]
  %s2 = inlined_call_operand.vmem [shape: f32[27,1], index: 2, kind: input, shape index: {}]
  %s3 = inlined_call_operand.vmem [shape: bf16[16,27], index: 3, kind: input, shape index: {}]
  %s4 = inlined_call_operand.vmem [shape: f32[16,1], index: 4, kind: input, shape index: {}]
  %s5 = inlined_call_operand.vmem [shape: bf16[1,16], index: 5, kind: input, shape index: {}]
  %s6 = inlined_call_operand.<no memory space> [shape: f32[1,1], index: 6, kind: input, shape index: {}]
  %s7 = inlined_call_operand.hbm [shape: f32[1,128], index: 7, kind: output, shape index: {}]
  %s8 = sld [smem:[#allocation0]]
  $region38: #{tpu_custom_call.1} parent=0
    _
  %s10 = ssub.s32 1, %s8
  %s11 = scalar_select 0, %s10, %s8
  %v12 = vstv %s6
  %13 = vst [vmem:[#allocation2] sm:$0x1] %v12
  $region1: #{tpu_custom_call.1} parent=0
    #allocation3 [shape = 'u8[512]{0}', space=vmem, size = 0x400, scoped, tag = 'output window, operand 0, single buffered']
    #allocation4 [shape = 's32[1]{0}', space=sflag, size = 0x4, scoped, tag = 'scoped memory for tpu_custom_call.1']
    %14 = vsyncpa [#allocation4], 0
    // Predicated region
    $region2: #{tpu_custom_call.1} parent=1 // pred_check
      _
    $region3: #{tpu_custom_call.1} parent=1 // pred_check_branch
      %16 = sbr.rel (0) target = $region5
    $region4: #{tpu_custom_call.1} parent=1 // pred_region
      _
    $region5: #{tpu_custom_call.1} parent=1 // pred_fallthru
      _
    // Predicated region
    $region6: #{tpu_custom_call.1} parent=1 // pred_check
      _
    $region7: #{tpu_custom_call.1} parent=1 // pred_check_branch
      %18 = sbr.rel (0) target = $region9
    $region8: #{tpu_custom_call.1} parent=1 // pred_region
      _
    $region9: #{tpu_custom_call.1} parent=1 // pred_fallthru
      _
    // Predicated region
    $region10: #{tpu_custom_call.1} parent=1 // pred_check
      _
    $region11: #{tpu_custom_call.1} parent=1 // pred_check_branch
      %20 = sbr.rel (0) target = $region13
    $region12: #{tpu_custom_call.1} parent=1 // pred_region
      _
    $region13: #{tpu_custom_call.1} parent=1 // pred_fallthru
      _
    // Predicated region
    $region14: #{tpu_custom_call.1} parent=1 // pred_check
      _
    $region15: #{tpu_custom_call.1} parent=1 // pred_check_branch
      %22 = sbr.rel (0) target = $region17
    $region16: #{tpu_custom_call.1} parent=1 // pred_region
      _
    $region17: #{tpu_custom_call.1} parent=1 // pred_fallthru
      _
    // Predicated region
    $region18: #{tpu_custom_call.1} parent=1 // pred_check
      _
    $region19: #{tpu_custom_call.1} parent=1 // pred_check_branch
      %24 = sbr.rel (0) target = $region21
    $region20: #{tpu_custom_call.1} parent=1 // pred_region
      _
    $region21: #{tpu_custom_call.1} parent=1 // pred_fallthru
      _
    // Predicated region
    $region22: #{tpu_custom_call.1} parent=1 // pred_check
      _
    $region23: #{tpu_custom_call.1} parent=1 // pred_check_branch
      %26 = sbr.rel (0) target = $region25
    $region24: #{tpu_custom_call.1} parent=1 // pred_region
      _
    $region25: #{tpu_custom_call.1} parent=1 // pred_fallthru
      _
    // Predicated region
    $region26: #{tpu_custom_call.1} parent=1 // pred_check
      _
    $region27: #{tpu_custom_call.1} parent=1 // pred_check_branch
      %28 = sbr.rel (0) target = $region29
    $region28: #{tpu_custom_call.1} parent=1 // pred_region
      _
    $region29: #{tpu_custom_call.1} parent=1 // pred_fallthru
      _
    %v30 = vld [vmem:[%s0] sm:$0xf]
    %v31 = vld [vmem:[%s0 + $0x4] sm:$0xf]
    %v32 = vld [vmem:[%s0 + $0x8] sm:$0xf]
    %v33 = vld [vmem:[%s0 + $0xc] sm:$0xf]
    %v34 = vld [vmem:[%s1] sm:$0xf]
    %v35 = vld [vmem:[%s1 + $0x4] sm:$0xf]
    %v36 = vld [vmem:[%s1 + $0x8] sm:$0xf]
    %v37 = vld [vmem:[%s1 + $0xc] sm:$0x3]
    %v38 = vld [vmem:[%s2] sm:$0xff]
    %v39 = vld [vmem:[%s2 + $0x8] sm:$0xff]
    %v40 = vld [vmem:[%s2 + $0x10] sm:$0xff]
    %v41 = vld [vmem:[%s2 + $0x18] sm:$0x7]
    %43 = vset.pattern.permute.xlu0 0
    %44 = vperm.xlu0 %43, %v38
    %v45 = vpop.permute.xlu0 %44
    %48 = vset.pattern.permute.xlu0 0
    %49 = vperm.xlu0 %48, %v39
    %v50 = vpop.permute.xlu0 %49
    %53 = vset.pattern.permute.xlu0 0
    %54 = vperm.xlu0 %53, %v40
    %v55 = vpop.permute.xlu0 %54
    %58 = vset.pattern.permute.xlu0 0
    %59 = vperm.xlu0 %58, %v41
    %v60 = vpop.permute.xlu0 %59
    %v66 = vunpack.c.l.b16 %v34
    %v67 = vunpack.c.l.b16 %v35
    %v68 = vunpack.c.l.b16 %v36
    %v69 = vunpack.c.l.b16 %v37
    %v70 = vpack.c.b16 %v67, %v66
    %v71 = vpack.c.b16 %v69, %v68
    %v76 = vunpack.c.l.b16 %v30
    %v77 = vunpack.c.l.b16 %v31
    %v78 = vunpack.c.l.b16 %v32
    %v79 = vunpack.c.l.b16 %v33
    %v80 = vpack.c.b16 %v77, %v76
    %v81 = vpack.c.b16 %v79, %v78
    %vm84 = vcmask 261120
    %v86 = vsel %vm84, %v70, 0
    %v89 = vsel %vm84, %v71, 0
    %91 = vmatprep.subr.bf16.mxu0 0
    %92 = vmatpush1.bf16.msra.mxu0 %v80
    %93 = vmatprep.subr.bf16.mxu0 0
    %94 = vmatpush1.bf16.msra.mxu0 %v81
    %95 = vmatprep.subr.bf16.mxu0 0
    %96 = vmatpush1.bf16.msra.mxu0 0
    %97 = vmatprep.subr.bf16.mxu0 0
    %98 = vmatpush1.bf16.msra.mxu0 0
    %99 = vmatprep.subr.bf16.mxu0 0
    %100 = vmatpush1.bf16.msra.mxu0 0
    %101 = vmatprep.subr.bf16.mxu0 0
    %102 = vmatpush1.bf16.msra.mxu0 0
    %103 = vmatprep.subr.bf16.mxu0 0
    %104 = vmatpush1.bf16.msra.mxu0 0
    %105 = vmatprep.subr.bf16.mxu0 0
    %106 = vmatpush1.bf16.msra.mxu0 0
    %107 = vmatprep.subr.bf16.mxu0 0
    %108 = vmatpush1.bf16.msra.mxu0 0
    %109 = vmatprep.subr.bf16.mxu0 0
    %110 = vmatpush1.bf16.msra.mxu0 0
    %111 = vmatprep.subr.bf16.mxu0 0
    %112 = vmatpush1.bf16.msra.mxu0 0
    %113 = vmatprep.subr.bf16.mxu0 0
    %114 = vmatpush1.bf16.msra.mxu0 0
    %115 = vmatprep.subr.bf16.mxu0 0
    %116 = vmatpush1.bf16.msra.mxu0 0
    %117 = vmatprep.subr.bf16.mxu0 0
    %118 = vmatpush1.bf16.msra.mxu0 0
    %119 = vmatprep.subr.bf16.mxu0 0
    %120 = vmatpush1.bf16.msra.mxu0 0
    %121 = vmatprep.subr.bf16.mxu0 0
    %122 = vmatpush1.bf16.msra.mxu0 0
    %123 = vmatprep.mubr.bf16.mxu0 0
    %124 = vmatmul.mubr.bf16.gmra.mrb[0].mxu0 %v86
    %v125 = vpop.f32.mrb[0].mxu0
    %v126 = vadd.f32 %v45, %v125
    %v127 = vpop.f32.mrb[0].mxu0
    %v128 = vpop.f32.mrb[0].mxu0
    %v129 = vadd.f32 %v50, %v128
    %v130 = vpop.f32.mrb[0].mxu0
    %131 = vmatprep.mubr.bf16.mxu0 0
    %132 = vmatmul.mubr.bf16.gmra.mrb[0].mxu0 %v89
    %v133 = vpop.f32.mrb[0].mxu0
    %v134 = vadd.f32 %v55, %v133
    %v135 = vpop.f32.mrb[0].mxu0
    %v136 = vpop.f32.mrb[0].mxu0
    %v137 = vadd.f32 %v60, %v136
    %v138 = vpop.f32.mrb[0].mxu0
    %139 = vdwg.mxu0
    %vm140 = vcmp.gt.f32.partialorder %v126, 0.0
    %vm141 = vcmp.gt.f32.partialorder %v129, 0.0
    %vm142 = vcmp.gt.f32.partialorder %v134, 0.0
    %vm143 = vcmp.gt.f32.partialorder %v137, 0.0
    %v144 = vmul.f32 %v126, 0.2
    %v145 = vmul.f32 %v129, 0.2
    %v146 = vmul.f32 %v134, 0.2
    %v147 = vmul.f32 %v137, 0.2
    %v148 = vsel %vm140, %v126, %v144
    %v149 = vsel %vm141, %v129, %v145
    %v150 = vsel %vm142, %v134, %v146
    %v151 = vsel %vm143, %v137, %v147
    %v152 = vld [vmem:[%s3] sm:$0xf]
    %v153 = vld [vmem:[%s3 + $0x4] sm:$0xf]
    %v154 = vpack.c.bf16 %v149, %v148
    %v155 = vpack.c.bf16 %v151, %v150
    %v156 = vld [vmem:[%s4] sm:$0xff]
    %v157 = vld [vmem:[%s4 + $0x8] sm:$0xff]
    %159 = vset.pattern.permute.xlu0 0
    %160 = vperm.xlu0 %159, %v156
    %v161 = vpop.permute.xlu0 %160
    %164 = vset.pattern.permute.xlu0 0
    %165 = vperm.xlu0 %164, %v157
    %v166 = vpop.permute.xlu0 %165
    %v170 = vunpack.c.l.b16 %v152
    %v171 = vunpack.c.l.b16 %v153
    %v172 = vpack.c.b16 %v171, %v170
    %vm173 = vcmask 220160
    %v175 = vsel %vm173, %v172, 0
    %vm177 = vcmask 1044480
    %vm178 = vcmask 1045504
    %v179 = vsel %vm177, 4294967295, 65535
    %v180 = vsel %vm178, %v179, 0
    %v182 = vand.u32 %v155, %v180
    %184 = vmatprep.subr.bf16.mxu0 0
    %185 = vmatpush1.bf16.msra.mxu0 %v154
    %186 = vmatprep.subr.bf16.mxu0 0
    %187 = vmatpush1.bf16.msra.mxu0 %v182
    %188 = vmatprep.subr.bf16.mxu0 0
    %189 = vmatpush1.bf16.msra.mxu0 0
    %190 = vmatprep.subr.bf16.mxu0 0
    %191 = vmatpush1.bf16.msra.mxu0 0
    %192 = vmatprep.subr.bf16.mxu0 0
    %193 = vmatpush1.bf16.msra.mxu0 0
    %194 = vmatprep.subr.bf16.mxu0 0
    %195 = vmatpush1.bf16.msra.mxu0 0
    %196 = vmatprep.subr.bf16.mxu0 0
    %197 = vmatpush1.bf16.msra.mxu0 0
    %198 = vmatprep.subr.bf16.mxu0 0
    %199 = vmatpush1.bf16.msra.mxu0 0
    %200 = vmatprep.subr.bf16.mxu0 0
    %201 = vmatpush1.bf16.msra.mxu0 0
    %202 = vmatprep.subr.bf16.mxu0 0
    %203 = vmatpush1.bf16.msra.mxu0 0
    %204 = vmatprep.subr.bf16.mxu0 0
    %205 = vmatpush1.bf16.msra.mxu0 0
    %206 = vmatprep.subr.bf16.mxu0 0
    %207 = vmatpush1.bf16.msra.mxu0 0
    %208 = vmatprep.subr.bf16.mxu0 0
    %209 = vmatpush1.bf16.msra.mxu0 0
    %210 = vmatprep.subr.bf16.mxu0 0
    %211 = vmatpush1.bf16.msra.mxu0 0
    %212 = vmatprep.subr.bf16.mxu0 0
    %213 = vmatpush1.bf16.msra.mxu0 0
    %214 = vmatprep.subr.bf16.mxu0 0
    %215 = vmatpush1.bf16.msra.mxu0 0
    %216 = vmatprep.mubr.bf16.mxu0 0
    %217 = vmatmul.mubr.bf16.gmra.mrb[0].mxu0 %v175
    %v218 = vpop.f32.mrb[0].mxu0
    %v219 = vadd.f32 %v161, %v218
    %v220 = vpop.f32.mrb[0].mxu0
    %v221 = vpop.f32.mrb[0].mxu0
    %v222 = vadd.f32 %v166, %v221
    %v223 = vpop.f32.mrb[0].mxu0
    %224 = vdwg.mxu0
    %vm225 = vcmp.gt.f32.partialorder %v219, 0.0
    %vm226 = vcmp.gt.f32.partialorder %v222, 0.0
    %v227 = vmul.f32 %v219, 0.2
    %v228 = vmul.f32 %v222, 0.2
    %v229 = vsel %vm225, %v219, %v227
    %v230 = vsel %vm226, %v222, %v228
    %v231 = vld [vmem:[%s5] sm:$0x1]
    %v232 = vpack.c.bf16 %v230, %v229
    %v233 = vld [vmem:[#allocation2] sm:$0x1]
    %235 = vset.pattern.permute.xlu0 0
    %236 = vperm.xlu0 %235, %v233
    %v237 = vpop.permute.xlu0 %236
    %v239 = vlaneseq
    %v240 = vshrl.u32 %v239, 7
    %v241 = vsub.s32 0, %v240
    %v242 = vrot.slane %v237, %v241
    %vm243 = vcmask 130048
    %v245 = vsel %vm243, %v231, 0
    %247 = vmatprep.subr.bf16.mxu0 0
    %248 = vmatpush1.bf16.msra.mxu0 %v232
    %249 = vmatprep.subr.bf16.mxu0 0
    %250 = vmatpush1.bf16.msra.mxu0 0
    %251 = vmatprep.subr.bf16.mxu0 0
    %252 = vmatpush1.bf16.msra.mxu0 0
    %253 = vmatprep.subr.bf16.mxu0 0
    %254 = vmatpush1.bf16.msra.mxu0 0
    %255 = vmatprep.subr.bf16.mxu0 0
    %256 = vmatpush1.bf16.msra.mxu0 0
    %257 = vmatprep.subr.bf16.mxu0 0
    %258 = vmatpush1.bf16.msra.mxu0 0
    %259 = vmatprep.subr.bf16.mxu0 0
    %260 = vmatpush1.bf16.msra.mxu0 0
    %261 = vmatprep.subr.bf16.mxu0 0
    %262 = vmatpush1.bf16.msra.mxu0 0
    %263 = vmatprep.subr.bf16.mxu0 0
    %264 = vmatpush1.bf16.msra.mxu0 0
    %265 = vmatprep.subr.bf16.mxu0 0
    %266 = vmatpush1.bf16.msra.mxu0 0
    %267 = vmatprep.subr.bf16.mxu0 0
    %268 = vmatpush1.bf16.msra.mxu0 0
    %269 = vmatprep.subr.bf16.mxu0 0
    %270 = vmatpush1.bf16.msra.mxu0 0
    %271 = vmatprep.subr.bf16.mxu0 0
    %272 = vmatpush1.bf16.msra.mxu0 0
    %273 = vmatprep.subr.bf16.mxu0 0
    %274 = vmatpush1.bf16.msra.mxu0 0
    %275 = vmatprep.subr.bf16.mxu0 0
    %276 = vmatpush1.bf16.msra.mxu0 0
    %277 = vmatprep.subr.bf16.mxu0 0
    %278 = vmatpush1.bf16.msra.mxu0 0
    %279 = vmatprep.mubr.bf16.mxu0 0
    %280 = vmatmul.mubr.bf16.gmra.mrb[0].mxu0 %v245
    %v281 = vpop.f32.mrb[0].mxu0
    %v282 = vadd.f32 %v242, %v281
    %v283 = vpop.f32.mrb[0].mxu0
    %v284 = vpop.f32.mrb[0].mxu0
    %v285 = vpop.f32.mrb[0].mxu0
    %286 = vdwg.mxu0
    %287 = vst [vmem:[#allocation3] sm:$0x1] %v282
    // Predicated region
    $region30: #{tpu_custom_call.1} parent=1 // pred_check
      _
    $region31: #{tpu_custom_call.1} parent=1 // pred_check_branch
      %289 = sbr.rel (0) target = $region33
    $region32: #{tpu_custom_call.1} parent=1 // pred_region
      %s291 = ssub.s32 16, 16
      %292 = vsyncadd [#allocation4], %s291
      %s294 = sshll.u32 [#allocation3], 4
      %s295 = int_to_ptr.vmem [resolvable:$true] %s294
      %297 = dma.vmem_to_hbm [thread:$0]  %s295, 16, %s7, [#allocation4]
    $region33: #{tpu_custom_call.1} parent=1 // pred_fallthru
      _
    // Predicated region
    $region34: #{tpu_custom_call.1} parent=1 // pred_check
      _
    $region35: #{tpu_custom_call.1} parent=1 // pred_check_branch
      %299 = sbr.rel (0) target = $region37
    $region36: #{tpu_custom_call.1} parent=1 // pred_region
      %300 = dma.done [#allocation4], 16
    $region37: #{tpu_custom_call.1} parent=1 // pred_fallthru
      _
    %301 = vsyncpa [#allocation4], 1

</llo_original>
